<compile_context>
chip_gen: v7x
topology: tpu7x:2x2x1
jax: 0.10.0
libtpu: 0.0.40
codegen_flags: <defaults>
</compile_context>

<pallas_src>
import functools

import jax
import jax.numpy as jnp
from jax.experimental import pallas as pl
from jax.experimental.pallas import tpu as pltpu  # noqa: F401  (TPU backend assumed)

# Small, module-consistent shapes.
BATCH = 2
N_IN = 128             # number of input points per cloud
FEAT_DIMS = 64         # feat_dims
NUM_POINTS = 64        # num_points (m) in Simple_Decoder
M3 = NUM_POINTS * 3    # decoder output channels per cloud (192)
OUT_SLAB = FEAT_DIMS + M3   # 256 -> single lane-dense output slab

ENC_H1 = 64
ENC_H2 = 128

# ---------------------------------------------------------------------------
# Packed parameter slab layout: every tensor lives at a static (row, col) window
# of one (SLAB_ROWS, 256) f32 array.  Row starts are multiples of 8 (sublanes).
# ---------------------------------------------------------------------------
_SLAB_ENTRIES = (
    ("w1t", ENC_H1, 3),          # encoder L1 weight stored transposed: (64, 3)
    ("b1c", ENC_H1, 1),          # encoder L1 bias as a column: (64, 1)
    ("w2",  ENC_H1, ENC_H2),     # (64, 128)
    ("b2",  1,      ENC_H2),     # (1, 128)
    ("w3",  ENC_H2, FEAT_DIMS),  # (128, 64)
    ("b3",  1,      FEAT_DIMS),  # (1, 64)
    ("d1",  FEAT_DIMS, FEAT_DIMS),
    ("db1", 1,         FEAT_DIMS),
    ("d2",  FEAT_DIMS, FEAT_DIMS),
    ("db2", 1,         FEAT_DIMS),
    ("d3",  FEAT_DIMS, M3),      # (64, 192)
    ("db3", 1,         M3),      # (1, 192)
)


def _round8(r):
    return (r + 7) // 8 * 8


def _build_layout():
    layout, off = {}, 0
    for name, rows, cols in _SLAB_ENTRIES:
        layout[name] = (off, rows, cols)
        off += _round8(rows)
    return layout, _round8(off)


SLAB_LAYOUT, SLAB_ROWS = _build_layout()   # 552 rows
SLAB_COLS = 256                            # lane-dense (multiple of 128)


def recon_kernel(x_ref, p_ref, out_ref, *, batch, n_pts):
    """Whole batch in one invocation.

    x_ref:   (batch, 3, n_pts) f32  -- native Conv1d layout, points lane-dense
    p_ref:   (SLAB_ROWS, 256) f32   -- packed parameter slab (single DMA)
    out_ref: (batch, 256) f32       -- [feature | decoded points] lane-dense slab
    """
    f32 = jnp.float32

    def pslice(name):
        r0, rows, cols = SLAB_LAYOUT[name]
        return p_ref[r0:r0 + rows, 0:cols]     # static window load (cheap view)

    # ---- Encoder layer 1, channels-first: h1cf[b] = relu(W1^T broadcast-FMA x[b]) ----
    r0, nr, _ = SLAB_LAYOUT["w1t"]
    w1c = [p_ref[r0:r0 + nr, c:c + 1] for c in range(3)]   # three (64, 1) columns
    b1c = pslice("b1c")                                    # (64, 1)

    h1cf_parts = []
    for b in range(batch):                 # static unroll (batch is tiny)
        xb = x_ref[b]                      # (3, n_pts)
        h = (w1c[0] * xb[0:1, :]
             + w1c[1] * xb[1:2, :]
             + w1c[2] * xb[2:3, :]
             + b1c)                        # (64, n_pts) via broadcast-FMAs (VPU)
        h1cf_parts.append(jnp.maximum(h, 0.0))

    # Stack per-cloud channel-first tiles -> aligned (batch*64, n_pts), one XLU transpose,
    # then re-stack as rows: h1 is (batch*n_pts, 64) with points on sublanes.
    stacked = jnp.concatenate(h1cf_parts, axis=0)          # (batch*64, n_pts)
    stacked_t = stacked.T                                  # (n_pts, batch*64)
    h1 = jnp.concatenate(
        [stacked_t[:, b * ENC_H1:(b + 1) * ENC_H1] for b in range(batch)],
        axis=0)                                            # (batch*n_pts, 64)

    # ---- Encoder layers 2/3 on the MXU (M = batch*n_pts = 256 rows) ----
    h2 = jnp.maximum(
        jnp.dot(h1, pslice("w2"), preferred_element_type=f32) + pslice("b2"), 0.0)
    h3 = jnp.dot(h2, pslice("w3"), preferred_element_type=f32) + pslice("b3")
    # (batch*n_pts, FEAT_DIMS)

    # ---- PointNet max-pool over points (sublane reduce per cloud) ----
    feat = jnp.max(h3.reshape(batch, n_pts, FEAT_DIMS), axis=1)   # (batch, 64)

    # ---- Simple_Decoder: 1x1 convs on a length-1 sequence == dense layers ----
    g = jnp.maximum(
        jnp.dot(feat, pslice("d1"), preferred_element_type=f32) + pslice("db1"), 0.0)
    g = jnp.maximum(
        jnp.dot(g, pslice("d2"), preferred_element_type=f32) + pslice("db2"), 0.0)
    g = jnp.dot(g, pslice("d3"), preferred_element_type=f32) + pslice("db3")
    # (batch, 192)

    # Single lane-dense (batch, 256) store.
    out_ref[...] = jnp.concatenate([feat, g], axis=-1)


def init_params(key):
    """Deterministic synthetic parameters (Conv1d kernel_size=1 => dense matrices).

    Weights stored already transposed, shape (C_in, C_out), so math is x @ W.
    Biases stored as (1, C_out) rows.
    """
    ks = jax.random.split(key, 12)

    def w(k, cin, cout):
        return (jax.random.normal(k, (cin, cout), jnp.float32) / jnp.sqrt(cin)).astype(jnp.float32)

    def b(k, cout):
        return (0.01 * jax.random.normal(k, (1, cout), jnp.float32)).astype(jnp.float32)

    return dict(
        ew1=w(ks[0], 3, ENC_H1),            eb1=b(ks[1], ENC_H1),
        ew2=w(ks[2], ENC_H1, ENC_H2),       eb2=b(ks[3], ENC_H2),
        ew3=w(ks[4], ENC_H2, FEAT_DIMS),    eb3=b(ks[5], FEAT_DIMS),
        dw1=w(ks[6], FEAT_DIMS, FEAT_DIMS), db1=b(ks[7], FEAT_DIMS),
        dw2=w(ks[8], FEAT_DIMS, FEAT_DIMS), db2=b(ks[9], FEAT_DIMS),
        dw3=w(ks[10], FEAT_DIMS, M3),       db3=b(ks[11], M3),
    )


def pack_params(p):
    """Pack all 12 parameter tensors into one (SLAB_ROWS, 256) f32 slab (done once)."""
    vals = dict(
        w1t=p["ew1"].T,                     # (64, 3)
        b1c=p["eb1"].reshape(ENC_H1, 1),    # (64, 1) column
        w2=p["ew2"],  b2=p["eb2"],
        w3=p["ew3"],  b3=p["eb3"],
        d1=p["dw1"],  db1=p["db1"],
        d2=p["dw2"],  db2=p["db2"],
        d3=p["dw3"],  db3=p["db3"],
    )
    slab = jnp.zeros((SLAB_ROWS, SLAB_COLS), jnp.float32)
    for name, (r0, rows, cols) in SLAB_LAYOUT.items():
        slab = slab.at[r0:r0 + rows, 0:cols].set(vals[name].astype(jnp.float32))
    return slab


def reconstruction_net(x_nchw, packed_params):
    """x_nchw: (B, 3, N) point cloud (PyTorch Conv1d layout), consumed as-is by the kernel.

    Returns (feature, output):
      feature: (B, feat_dims, 1)   -- encoder global feature (Conv1d-compatible)
      output:  (B, num_points, 3)  -- reconstructed point cloud
    """
    B, C, N = x_nchw.shape
    assert C == 3

    kernel = functools.partial(recon_kernel, batch=B, n_pts=N)

    flops = (2 * B * N * (3 * ENC_H1 + ENC_H1 * ENC_H2 + ENC_H2 * FEAT_DIMS)
             + 2 * B * (FEAT_DIMS * FEAT_DIMS
                        + FEAT_DIMS * FEAT_DIMS
                        + FEAT_DIMS * M3))
    bytes_accessed = 4 * (B * 3 * N + SLAB_ROWS * SLAB_COLS + B * OUT_SLAB)

    out = pl.pallas_call(
        kernel,
        out_shape=jax.ShapeDtypeStruct((B, OUT_SLAB), jnp.float32),
        cost_estimate=pl.CostEstimate(flops=flops,
                                      transcendentals=0,
                                      bytes_accessed=bytes_accessed),
    )(x_nchw.astype(jnp.float32), packed_params)

    feature = out[:, :FEAT_DIMS].reshape(B, FEAT_DIMS, 1)   # PyTorch encoder layout
    output = out[:, FEAT_DIMS:].reshape(B, NUM_POINTS, 3)   # matches x.reshape(-1, m, 3)
    return feature, output


def reference_forward(x_nchw, p):
    """Pure-JAX reference (numerically identical semantics), on the unpacked params."""
    x = jnp.transpose(x_nchw, (0, 2, 1)).astype(jnp.float32)
    h = jax.nn.relu(x @ p["ew1"] + p["eb1"])
    h = jax.nn.relu(h @ p["ew2"] + p["eb2"])
    h = h @ p["ew3"] + p["eb3"]
    feat = jnp.max(h, axis=1)                        # (B, FEAT)
    g = jax.nn.relu(feat @ p["dw1"] + p["db1"])
    g = jax.nn.relu(g @ p["dw2"] + p["db2"])
    g = g @ p["dw3"] + p["db3"]
    return feat.reshape(-1, FEAT_DIMS, 1), g.reshape(-1, NUM_POINTS, 3)


if __name__ == "__main__":
    key = jax.random.PRNGKey(0)
    k_x, k_p = jax.random.split(key)

    # PyTorch-style Conv1d input: (B, C_in=3, N) -- fed to the kernel in this layout.
    x = jax.random.normal(k_x, (BATCH, 3, N_IN), jnp.float32)
    params = init_params(k_p)
    packed = pack_params(params)          # one-time packing into the parameter slab

    fwd = jax.jit(reconstruction_net)
    feature, output = fwd(x, packed)
    feature = jax.block_until_ready(feature)
    output = jax.block_until_ready(output)

    ref_feat, ref_out = reference_forward(x, params)
    assert feature.shape == (BATCH, FEAT_DIMS, 1)
    assert output.shape == (BATCH, NUM_POINTS, 3)
    assert jnp.allclose(feature, ref_feat, atol=1e-5, rtol=1e-5)
    assert jnp.allclose(output, ref_out, atol=1e-5, rtol=1e-5)

    print("KERNEL_OK")
</pallas_src>

<mosaic_0001>
module attributes {stable_mosaic.version = 11 : i64} {
  func.func @recon_kernel(%arg0: memref<2x3x128xf32, #tpu.memory_space<vmem>>, %arg1: memref<552x256xf32, #tpu.memory_space<vmem>>, %arg2: memref<2x256xf32, #tpu.memory_space<vmem>>) attributes {dimension_semantics = [], scalar_prefetch = 0 : i64, scratch_operands = 0 : i64, tpu.core_type = #tpu.core_type<tc>} {
    %c0 = arith.constant 0 : index
    %c0_0 = arith.constant 0 : index
    %0 = vector.load %arg1[%c0, %c0_0] : memref<552x256xf32, #tpu.memory_space<vmem>>, vector<64x1xf32>
    %c0_1 = arith.constant 0 : index
    %c1 = arith.constant 1 : index
    %1 = vector.load %arg1[%c0_1, %c1] : memref<552x256xf32, #tpu.memory_space<vmem>>, vector<64x1xf32>
    %c0_2 = arith.constant 0 : index
    %c2 = arith.constant 2 : index
    %2 = vector.load %arg1[%c0_2, %c2] : memref<552x256xf32, #tpu.memory_space<vmem>>, vector<64x1xf32>
    %c64 = arith.constant 64 : index
    %c0_3 = arith.constant 0 : index
    %3 = vector.load %arg1[%c64, %c0_3] : memref<552x256xf32, #tpu.memory_space<vmem>>, vector<64x1xf32>
    %c0_4 = arith.constant 0 : index
    %c0_5 = arith.constant 0 : index
    %c0_6 = arith.constant 0 : index
    %4 = vector.load %arg0[%c0_4, %c0_5, %c0_6] : memref<2x3x128xf32, #tpu.memory_space<vmem>>, vector<1x3x128xf32>
    %5 = vector.shape_cast %4 : vector<1x3x128xf32> to vector<3x128xf32>
    %6 = vector.extract_strided_slice %5 {offsets = [0, 0], sizes = [1, 128], strides = [1, 1]} : vector<3x128xf32> to vector<1x128xf32>
    %7 = vector.broadcast %0 : vector<64x1xf32> to vector<64x128xf32>
    %8 = vector.broadcast %6 : vector<1x128xf32> to vector<64x128xf32>
    %9 = arith.mulf %7, %8 : vector<64x128xf32>
    %10 = vector.extract_strided_slice %5 {offsets = [1, 0], sizes = [1, 128], strides = [1, 1]} : vector<3x128xf32> to vector<1x128xf32>
    %11 = vector.broadcast %1 : vector<64x1xf32> to vector<64x128xf32>
    %12 = vector.broadcast %10 : vector<1x128xf32> to vector<64x128xf32>
    %13 = arith.mulf %11, %12 : vector<64x128xf32>
    %14 = arith.addf %9, %13 : vector<64x128xf32>
    %15 = vector.extract_strided_slice %5 {offsets = [2, 0], sizes = [1, 128], strides = [1, 1]} : vector<3x128xf32> to vector<1x128xf32>
    %16 = vector.broadcast %2 : vector<64x1xf32> to vector<64x128xf32>
    %17 = vector.broadcast %15 : vector<1x128xf32> to vector<64x128xf32>
    %18 = arith.mulf %16, %17 : vector<64x128xf32>
    %19 = arith.addf %14, %18 : vector<64x128xf32>
    %20 = vector.broadcast %3 : vector<64x1xf32> to vector<64x128xf32>
    %21 = arith.addf %19, %20 : vector<64x128xf32>
    %cst = arith.constant 0.000000e+00 : f32
    %22 = vector.broadcast %cst : f32 to vector<64x128xf32>
    %23 = arith.maximumf %21, %22 : vector<64x128xf32>
    %c1_7 = arith.constant 1 : index
    %c0_8 = arith.constant 0 : index
    %c0_9 = arith.constant 0 : index
    %24 = vector.load %arg0[%c1_7, %c0_8, %c0_9] : memref<2x3x128xf32, #tpu.memory_space<vmem>>, vector<1x3x128xf32>
    %25 = vector.shape_cast %24 : vector<1x3x128xf32> to vector<3x128xf32>
    %26 = vector.extract_strided_slice %25 {offsets = [0, 0], sizes = [1, 128], strides = [1, 1]} : vector<3x128xf32> to vector<1x128xf32>
    %27 = vector.broadcast %0 : vector<64x1xf32> to vector<64x128xf32>
    %28 = vector.broadcast %26 : vector<1x128xf32> to vector<64x128xf32>
    %29 = arith.mulf %27, %28 : vector<64x128xf32>
    %30 = vector.extract_strided_slice %25 {offsets = [1, 0], sizes = [1, 128], strides = [1, 1]} : vector<3x128xf32> to vector<1x128xf32>
    %31 = vector.broadcast %1 : vector<64x1xf32> to vector<64x128xf32>
    %32 = vector.broadcast %30 : vector<1x128xf32> to vector<64x128xf32>
    %33 = arith.mulf %31, %32 : vector<64x128xf32>
    %34 = arith.addf %29, %33 : vector<64x128xf32>
    %35 = vector.extract_strided_slice %25 {offsets = [2, 0], sizes = [1, 128], strides = [1, 1]} : vector<3x128xf32> to vector<1x128xf32>
    %36 = vector.broadcast %2 : vector<64x1xf32> to vector<64x128xf32>
    %37 = vector.broadcast %35 : vector<1x128xf32> to vector<64x128xf32>
    %38 = arith.mulf %36, %37 : vector<64x128xf32>
    %39 = arith.addf %34, %38 : vector<64x128xf32>
    %40 = vector.broadcast %3 : vector<64x1xf32> to vector<64x128xf32>
    %41 = arith.addf %39, %40 : vector<64x128xf32>
    %cst_10 = arith.constant 0.000000e+00 : f32
    %42 = vector.broadcast %cst_10 : f32 to vector<64x128xf32>
    %43 = arith.maximumf %41, %42 : vector<64x128xf32>
    %44 = tpu.concatenate %23, %43 in 0 : vector<64x128xf32>, vector<64x128xf32> -> vector<128x128xf32>
    %45 = tpu.transpose %44, [1, 0] : vector<128x128xf32> -> vector<128x128xf32>
    %46 = vector.extract_strided_slice %45 {offsets = [0, 0], sizes = [128, 64], strides = [1, 1]} : vector<128x128xf32> to vector<128x64xf32>
    %47 = vector.extract_strided_slice %45 {offsets = [0, 64], sizes = [128, 64], strides = [1, 1]} : vector<128x128xf32> to vector<128x64xf32>
    %48 = tpu.concatenate %46, %47 in 0 : vector<128x64xf32>, vector<128x64xf32> -> vector<256x64xf32>
    %c128 = arith.constant 128 : index
    %c0_11 = arith.constant 0 : index
    %49 = vector.load %arg1[%c128, %c0_11] : memref<552x256xf32, #tpu.memory_space<vmem>>, vector<64x128xf32>
    %cst_12 = arith.constant dense<0.000000e+00> : vector<256x128xf32>
    %50 = tpu.matmul %48, %49, %cst_12 {dimension_numbers = #tpu.dot_dimension_numbers<[1], [0], [0], [1], [0, 0, 1, 1], [], []>} : vector<256x64xf32>, vector<64x128xf32>, vector<256x128xf32> -> vector<256x128xf32>
    %c192 = arith.constant 192 : index
    %c0_13 = arith.constant 0 : index
    %51 = vector.load %arg1[%c192, %c0_13] : memref<552x256xf32, #tpu.memory_space<vmem>>, vector<1x128xf32>
    %52 = vector.broadcast %51 : vector<1x128xf32> to vector<256x128xf32>
    %53 = arith.addf %50, %52 : vector<256x128xf32>
    %cst_14 = arith.constant 0.000000e+00 : f32
    %54 = vector.broadcast %cst_14 : f32 to vector<256x128xf32>
    %55 = arith.maximumf %53, %54 : vector<256x128xf32>
    %c200 = arith.constant 200 : index
    %c0_15 = arith.constant 0 : index
    %56 = vector.load %arg1[%c200, %c0_15] : memref<552x256xf32, #tpu.memory_space<vmem>>, vector<128x64xf32>
    %cst_16 = arith.constant dense<0.000000e+00> : vector<256x64xf32>
    %57 = tpu.matmul %55, %56, %cst_16 {dimension_numbers = #tpu.dot_dimension_numbers<[1], [0], [0], [1], [0, 0, 1, 1], [], []>} : vector<256x128xf32>, vector<128x64xf32>, vector<256x64xf32> -> vector<256x64xf32>
    %c328 = arith.constant 328 : index
    %c0_17 = arith.constant 0 : index
    %58 = vector.load %arg1[%c328, %c0_17] : memref<552x256xf32, #tpu.memory_space<vmem>>, vector<1x64xf32>
    %59 = vector.broadcast %58 : vector<1x64xf32> to vector<256x64xf32>
    %60 = arith.addf %57, %59 : vector<256x64xf32>
    %61 = vector.shape_cast %60 : vector<256x64xf32> to vector<2x128x64xf32>
    %cst_18 = arith.constant dense<0xFF800000> : vector<2x64xf32>
    %62 = vector.multi_reduction <maximumf>, %61, %cst_18 [1] : vector<2x128x64xf32> to vector<2x64xf32>
    %c336 = arith.constant 336 : index
    %c0_19 = arith.constant 0 : index
    %63 = vector.load %arg1[%c336, %c0_19] : memref<552x256xf32, #tpu.memory_space<vmem>>, vector<64x64xf32>
    %cst_20 = arith.constant dense<0.000000e+00> : vector<2x64xf32>
    %64 = tpu.matmul %62, %63, %cst_20 {dimension_numbers = #tpu.dot_dimension_numbers<[1], [0], [0], [1], [0, 0, 1, 1], [], []>} : vector<2x64xf32>, vector<64x64xf32>, vector<2x64xf32> -> vector<2x64xf32>
    %c400 = arith.constant 400 : index
    %c0_21 = arith.constant 0 : index
    %65 = vector.load %arg1[%c400, %c0_21] : memref<552x256xf32, #tpu.memory_space<vmem>>, vector<1x64xf32>
    %66 = vector.broadcast %65 : vector<1x64xf32> to vector<2x64xf32>
    %67 = arith.addf %64, %66 : vector<2x64xf32>
    %cst_22 = arith.constant 0.000000e+00 : f32
    %68 = vector.broadcast %cst_22 : f32 to vector<2x64xf32>
    %69 = arith.maximumf %67, %68 : vector<2x64xf32>
    %c408 = arith.constant 408 : index
    %c0_23 = arith.constant 0 : index
    %70 = vector.load %arg1[%c408, %c0_23] : memref<552x256xf32, #tpu.memory_space<vmem>>, vector<64x64xf32>
    %cst_24 = arith.constant dense<0.000000e+00> : vector<2x64xf32>
    %71 = tpu.matmul %69, %70, %cst_24 {dimension_numbers = #tpu.dot_dimension_numbers<[1], [0], [0], [1], [0, 0, 1, 1], [], []>} : vector<2x64xf32>, vector<64x64xf32>, vector<2x64xf32> -> vector<2x64xf32>
    %c472 = arith.constant 472 : index
    %c0_25 = arith.constant 0 : index
    %72 = vector.load %arg1[%c472, %c0_25] : memref<552x256xf32, #tpu.memory_space<vmem>>, vector<1x64xf32>
    %73 = vector.broadcast %72 : vector<1x64xf32> to vector<2x64xf32>
    %74 = arith.addf %71, %73 : vector<2x64xf32>
    %cst_26 = arith.constant 0.000000e+00 : f32
    %75 = vector.broadcast %cst_26 : f32 to vector<2x64xf32>
    %76 = arith.maximumf %74, %75 : vector<2x64xf32>
    %c480 = arith.constant 480 : index
    %c0_27 = arith.constant 0 : index
    %77 = vector.load %arg1[%c480, %c0_27] : memref<552x256xf32, #tpu.memory_space<vmem>>, vector<64x192xf32>
    %cst_28 = arith.constant dense<0.000000e+00> : vector<2x192xf32>
    %78 = tpu.matmul %76, %77, %cst_28 {dimension_numbers = #tpu.dot_dimension_numbers<[1], [0], [0], [1], [0, 0, 1, 1], [], []>} : vector<2x64xf32>, vector<64x192xf32>, vector<2x192xf32> -> vector<2x192xf32>
    %c544 = arith.constant 544 : index
    %c0_29 = arith.constant 0 : index
    %79 = vector.load %arg1[%c544, %c0_29] : memref<552x256xf32, #tpu.memory_space<vmem>>, vector<1x192xf32>
    %80 = vector.broadcast %79 : vector<1x192xf32> to vector<2x192xf32>
    %81 = arith.addf %78, %80 : vector<2x192xf32>
    %82 = tpu.concatenate %62, %81 in 1 : vector<2x64xf32>, vector<2x192xf32> -> vector<2x256xf32>
    %c0_30 = arith.constant 0 : index
    %c0_31 = arith.constant 0 : index
    %83 = vector.load %arg2[%c0_30, %c0_31] : memref<2x256xf32, #tpu.memory_space<vmem>>, vector<2x256xf32>
    tpu.vector_store %arg2[%c0_30, %c0_31], %82 {strides = array<i32>} : memref<2x256xf32, #tpu.memory_space<vmem>>, vector<2x256xf32>,
    return
  }
}

</mosaic_0001>

<llo_original>
// kernel: reconstruction_net.1
$region0: #{reconstruction_net.1}
  #allocation0 [shape = 'u32[]', space=smem, size = 0x4, offset = 0x4, fixed_abs, tag = 'smem constant byte address 0x4 - core index']
  #allocation1 [shape = 'u32[144,128]{1,0:T(1,128)}', space=vmem, size = 0x12000, scoped, tag = 'internal scratch']
  %s0 = inlined_call_operand.vmem [shape: f32[2,3,128], index: 0, kind: input, shape index: {}]
  %s1 = inlined_call_operand.hbm [shape: f32[552,256], index: 1, kind: input, shape index: {}]
  %s2 = inlined_call_operand.vmem [shape: f32[2,256], index: 2, kind: output, shape index: {}]
  %s3 = sld [smem:[#allocation0]]
  $region22: #{reconstruction_net.1} parent=0
    _
  %s5 = ssub.s32 1, %s3
  %s6 = scalar_select 0, %s5, %s3
  $region1: #{reconstruction_net.1} parent=0
    #allocation2 [shape = 'u8[565248]{0}', space=vmem, size = 0x8a000, scoped, tag = 'input window, operand 1, single buffered']
    #allocation3 [shape = 's32[1]{0}', space=sflag, size = 0x4, scoped, tag = 'scoped memory for reconstruction_net.1']
    %7 = vsyncpa [#allocation3], 0
    // Predicated region
    $region2: #{reconstruction_net.1} parent=1 // pred_check
      _
    $region3: #{reconstruction_net.1} parent=1 // pred_check_branch
      %9 = sbr.rel (0) target = $region5
    $region4: #{reconstruction_net.1} parent=1 // pred_region
      _
    $region5: #{reconstruction_net.1} parent=1 // pred_fallthru
      _
    // Predicated region
    $region6: #{reconstruction_net.1} parent=1 // pred_check
      _
    $region7: #{reconstruction_net.1} parent=1 // pred_check_branch
      %11 = sbr.rel (0) target = $region9
    $region8: #{reconstruction_net.1} parent=1 // pred_region
      %s13 = ssub.s32 17664, 17664
      %14 = vsyncadd [#allocation3], %s13
      %s15 = sshll.u32 [#allocation2], 4
      %s16 = int_to_ptr.vmem [resolvable:$true] %s15
      %21 = dma.hbm_to_vmem [thread:$0]  %s1, 17664, %s16, [#allocation3], 256, 256, 16
    $region9: #{reconstruction_net.1} parent=1 // pred_fallthru
      _
    // Predicated region
    $region10: #{reconstruction_net.1} parent=1 // pred_check
      _
    $region11: #{reconstruction_net.1} parent=1 // pred_check_branch
      %23 = sbr.rel (0) target = $region13
    $region12: #{reconstruction_net.1} parent=1 // pred_region
      %24 = dma.done [#allocation3], 17664
    $region13: #{reconstruction_net.1} parent=1 // pred_fallthru
      _
    %v25 = vld [vmem:[#allocation2] sm:$0xff]
    %v26 = vld [vmem:[#allocation2 + $0x10] sm:$0xff]
    %v27 = vld [vmem:[#allocation2 + $0x20] sm:$0xff]
    %v28 = vld [vmem:[#allocation2 + $0x30] sm:$0xff]
    %v29 = vld [vmem:[#allocation2 + $0x40] sm:$0xff]
    %v30 = vld [vmem:[#allocation2 + $0x50] sm:$0xff]
    %v31 = vld [vmem:[#allocation2 + $0x60] sm:$0xff]
    %v32 = vld [vmem:[#allocation2 + $0x70] sm:$0xff]
    %v33 = vld [vmem:[#allocation2 + $0x80] sm:$0xff]
    %v34 = vld [vmem:[#allocation2 + $0x90] sm:$0xff]
    %v35 = vld [vmem:[#allocation2 + $0xa0] sm:$0xff]
    %v36 = vld [vmem:[#allocation2 + $0xb0] sm:$0xff]
    %v37 = vld [vmem:[#allocation2 + $0xc0] sm:$0xff]
    %v38 = vld [vmem:[#allocation2 + $0xd0] sm:$0xff]
    %v39 = vld [vmem:[#allocation2 + $0xe0] sm:$0xff]
    %v40 = vld [vmem:[#allocation2 + $0xf0] sm:$0xff]
    %v41 = vld [vmem:[%s0] sm:$0x7]
    %43 = vset.pattern.permute.xlu0 0
    %44 = vperm.xlu0 %43, %v25
    %v45 = vpop.permute.xlu0 %44
    %48 = vset.pattern.permute.xlu0 0
    %49 = vperm.xlu0 %48, %v26
    %v50 = vpop.permute.xlu0 %49
    %53 = vset.pattern.permute.xlu0 0
    %54 = vperm.xlu0 %53, %v27
    %v55 = vpop.permute.xlu0 %54
    %58 = vset.pattern.permute.xlu0 0
    %59 = vperm.xlu0 %58, %v28
    %v60 = vpop.permute.xlu0 %59
    %63 = vset.pattern.permute.xlu0 0
    %64 = vperm.xlu0 %63, %v29
    %v65 = vpop.permute.xlu0 %64
    %68 = vset.pattern.permute.xlu0 0
    %69 = vperm.xlu0 %68, %v30
    %v70 = vpop.permute.xlu0 %69
    %73 = vset.pattern.permute.xlu0 0
    %74 = vperm.xlu0 %73, %v31
    %v75 = vpop.permute.xlu0 %74
    %78 = vset.pattern.permute.xlu0 0
    %79 = vperm.xlu0 %78, %v32
    %v80 = vpop.permute.xlu0 %79
    %v82 = vlaneseq
    %v83 = vshrl.u32 %v82, 7
    %v84 = vsub.s32 0, %v83
    %v85 = vrot.slane %v41, %v84
    %v86 = vmul.f32 %v45, %v85
    %v87 = vmul.f32 %v50, %v85
    %v88 = vmul.f32 %v55, %v85
    %v89 = vmul.f32 %v60, %v85
    %v90 = vmul.f32 %v65, %v85
    %v91 = vmul.f32 %v70, %v85
    %v92 = vmul.f32 %v75, %v85
    %v93 = vmul.f32 %v80, %v85
    %94 = vset.pattern.permute.xlu0 1
    %95 = vperm.xlu0 %94, %v25
    %v96 = vpop.permute.xlu0 %95
    %98 = vset.pattern.permute.xlu0 1
    %99 = vperm.xlu0 %98, %v26
    %v100 = vpop.permute.xlu0 %99
    %102 = vset.pattern.permute.xlu0 1
    %103 = vperm.xlu0 %102, %v27
    %v104 = vpop.permute.xlu0 %103
    %106 = vset.pattern.permute.xlu0 1
    %107 = vperm.xlu0 %106, %v28
    %v108 = vpop.permute.xlu0 %107
    %110 = vset.pattern.permute.xlu0 1
    %111 = vperm.xlu0 %110, %v29
    %v112 = vpop.permute.xlu0 %111
    %114 = vset.pattern.permute.xlu0 1
    %115 = vperm.xlu0 %114, %v30
    %v116 = vpop.permute.xlu0 %115
    %118 = vset.pattern.permute.xlu0 1
    %119 = vperm.xlu0 %118, %v31
    %v120 = vpop.permute.xlu0 %119
    %122 = vset.pattern.permute.xlu0 1
    %123 = vperm.xlu0 %122, %v32
    %v124 = vpop.permute.xlu0 %123
    %v126 = vlaneseq
    %v127 = vshrl.u32 %v126, 7
    %v128 = vsub.s32 1, %v127
    %v129 = vrot.slane %v41, %v128
    %v130 = vmul.f32 %v96, %v129
    %v131 = vmul.f32 %v100, %v129
    %v132 = vmul.f32 %v104, %v129
    %v133 = vmul.f32 %v108, %v129
    %v134 = vmul.f32 %v112, %v129
    %v135 = vmul.f32 %v116, %v129
    %v136 = vmul.f32 %v120, %v129
    %v137 = vmul.f32 %v124, %v129
    %v138 = vadd.f32 %v86, %v130
    %v139 = vadd.f32 %v87, %v131
    %v140 = vadd.f32 %v88, %v132
    %v141 = vadd.f32 %v89, %v133
    %v142 = vadd.f32 %v90, %v134
    %v143 = vadd.f32 %v91, %v135
    %v144 = vadd.f32 %v92, %v136
    %v145 = vadd.f32 %v93, %v137
    %146 = vset.pattern.permute.xlu0 2
    %147 = vperm.xlu0 %146, %v25
    %v148 = vpop.permute.xlu0 %147
    %150 = vset.pattern.permute.xlu0 2
    %151 = vperm.xlu0 %150, %v26
    %v152 = vpop.permute.xlu0 %151
    %154 = vset.pattern.permute.xlu0 2
    %155 = vperm.xlu0 %154, %v27
    %v156 = vpop.permute.xlu0 %155
    %158 = vset.pattern.permute.xlu0 2
    %159 = vperm.xlu0 %158, %v28
    %v160 = vpop.permute.xlu0 %159
    %162 = vset.pattern.permute.xlu0 2
    %163 = vperm.xlu0 %162, %v29
    %v164 = vpop.permute.xlu0 %163
    %166 = vset.pattern.permute.xlu0 2
    %167 = vperm.xlu0 %166, %v30
    %v168 = vpop.permute.xlu0 %167
    %170 = vset.pattern.permute.xlu0 2
    %171 = vperm.xlu0 %170, %v31
    %v172 = vpop.permute.xlu0 %171
    %174 = vset.pattern.permute.xlu0 2
    %175 = vperm.xlu0 %174, %v32
    %v176 = vpop.permute.xlu0 %175
    %v178 = vlaneseq
    %v179 = vshrl.u32 %v178, 7
    %v180 = vsub.s32 2, %v179
    %v181 = vrot.slane %v41, %v180
    %v182 = vmul.f32 %v148, %v181
    %v183 = vmul.f32 %v152, %v181
    %v184 = vmul.f32 %v156, %v181
    %v185 = vmul.f32 %v160, %v181
    %v186 = vmul.f32 %v164, %v181
    %v187 = vmul.f32 %v168, %v181
    %v188 = vmul.f32 %v172, %v181
    %v189 = vmul.f32 %v176, %v181
    %v190 = vadd.f32 %v138, %v182
    %v191 = vadd.f32 %v139, %v183
    %v192 = vadd.f32 %v140, %v184
    %v193 = vadd.f32 %v141, %v185
    %v194 = vadd.f32 %v142, %v186
    %v195 = vadd.f32 %v143, %v187
    %v196 = vadd.f32 %v144, %v188
    %v197 = vadd.f32 %v145, %v189
    %199 = vset.pattern.permute.xlu0 0
    %200 = vperm.xlu0 %199, %v33
    %v201 = vpop.permute.xlu0 %200
    %204 = vset.pattern.permute.xlu0 0
    %205 = vperm.xlu0 %204, %v34
    %v206 = vpop.permute.xlu0 %205
    %209 = vset.pattern.permute.xlu0 0
    %210 = vperm.xlu0 %209, %v35
    %v211 = vpop.permute.xlu0 %210
    %214 = vset.pattern.permute.xlu0 0
    %215 = vperm.xlu0 %214, %v36
    %v216 = vpop.permute.xlu0 %215
    %219 = vset.pattern.permute.xlu0 0
    %220 = vperm.xlu0 %219, %v37
    %v221 = vpop.permute.xlu0 %220
    %224 = vset.pattern.permute.xlu0 0
    %225 = vperm.xlu0 %224, %v38
    %v226 = vpop.permute.xlu0 %225
    %229 = vset.pattern.permute.xlu0 0
    %230 = vperm.xlu0 %229, %v39
    %v231 = vpop.permute.xlu0 %230
    %234 = vset.pattern.permute.xlu0 0
    %235 = vperm.xlu0 %234, %v40
    %v236 = vpop.permute.xlu0 %235
    %v238 = vadd.f32 %v190, %v201
    %v239 = vadd.f32 %v191, %v206
    %v240 = vadd.f32 %v192, %v211
    %v241 = vadd.f32 %v193, %v216
    %v242 = vadd.f32 %v194, %v221
    %v243 = vadd.f32 %v195, %v226
    %v244 = vadd.f32 %v196, %v231
    %v245 = vadd.f32 %v197, %v236
    %v246 = vmax.f32 %v238, 0.0
    %v247 = vmax.f32 %v239, 0.0
    %v248 = vmax.f32 %v240, 0.0
    %v249 = vmax.f32 %v241, 0.0
    %v250 = vmax.f32 %v242, 0.0
    %v251 = vmax.f32 %v243, 0.0
    %v252 = vmax.f32 %v244, 0.0
    %v253 = vmax.f32 %v245, 0.0
    %s254 = scalar_lea.vmem %s0, 4
    %v255 = vld [vmem:[%s254] sm:$0x7]
    %v256 = vlaneseq
    %v257 = vshrl.u32 %v256, 7
    %v258 = vsub.s32 0, %v257
    %v259 = vrot.slane %v255, %v258
    %v260 = vmul.f32 %v45, %v259
    %v261 = vmul.f32 %v50, %v259
    %v262 = vmul.f32 %v55, %v259
    %v263 = vmul.f32 %v60, %v259
    %v264 = vmul.f32 %v65, %v259
    %v265 = vmul.f32 %v70, %v259
    %v266 = vmul.f32 %v75, %v259
    %v267 = vmul.f32 %v80, %v259
    %v268 = vlaneseq
    %v269 = vshrl.u32 %v268, 7
    %v270 = vsub.s32 1, %v269
    %v271 = vrot.slane %v255, %v270
    %v272 = vmul.f32 %v96, %v271
    %v273 = vmul.f32 %v100, %v271
    %v274 = vmul.f32 %v104, %v271
    %v275 = vmul.f32 %v108, %v271
    %v276 = vmul.f32 %v112, %v271
    %v277 = vmul.f32 %v116, %v271
    %v278 = vmul.f32 %v120, %v271
    %v279 = vmul.f32 %v124, %v271
    %v280 = vadd.f32 %v260, %v272
    %v281 = vadd.f32 %v261, %v273
    %v282 = vadd.f32 %v262, %v274
    %v283 = vadd.f32 %v263, %v275
    %v284 = vadd.f32 %v264, %v276
    %v285 = vadd.f32 %v265, %v277
    %v286 = vadd.f32 %v266, %v278
    %v287 = vadd.f32 %v267, %v279
    %v288 = vlaneseq
    %v289 = vshrl.u32 %v288, 7
    %v290 = vsub.s32 2, %v289
    %v291 = vrot.slane %v255, %v290
    %v292 = vmul.f32 %v148, %v291
    %v293 = vmul.f32 %v152, %v291
    %v294 = vmul.f32 %v156, %v291
    %v295 = vmul.f32 %v160, %v291
    %v296 = vmul.f32 %v164, %v291
    %v297 = vmul.f32 %v168, %v291
    %v298 = vmul.f32 %v172, %v291
    %v299 = vmul.f32 %v176, %v291
    %v300 = vadd.f32 %v280, %v292
    %v301 = vadd.f32 %v281, %v293
    %v302 = vadd.f32 %v282, %v294
    %v303 = vadd.f32 %v283, %v295
    %v304 = vadd.f32 %v284, %v296
    %v305 = vadd.f32 %v285, %v297
    %v306 = vadd.f32 %v286, %v298
    %v307 = vadd.f32 %v287, %v299
    %v308 = vadd.f32 %v300, %v201
    %v309 = vadd.f32 %v301, %v206
    %v310 = vadd.f32 %v302, %v211
    %v311 = vadd.f32 %v303, %v216
    %v312 = vadd.f32 %v304, %v221
    %v313 = vadd.f32 %v305, %v226
    %v314 = vadd.f32 %v306, %v231
    %v315 = vadd.f32 %v307, %v236
    %v316 = vmax.f32 %v308, 0.0
    %v317 = vmax.f32 %v309, 0.0
    %v318 = vmax.f32 %v310, 0.0
    %v319 = vmax.f32 %v311, 0.0
    %v320 = vmax.f32 %v312, 0.0
    %v321 = vmax.f32 %v313, 0.0
    %v322 = vmax.f32 %v314, 0.0
    %v323 = vmax.f32 %v315, 0.0
    %324 = vxpose.xlu0.b32.start [1/16] %v246, 128
    %325 = vxpose.xlu0.b32.cont [2/16] %v247, 128
    %326 = vxpose.xlu0.b32.cont [3/16] %v248, 128
    %327 = vxpose.xlu0.b32.cont [4/16] %v249, 128
    %328 = vxpose.xlu0.b32.cont [5/16] %v250, 128
    %329 = vxpose.xlu0.b32.cont [6/16] %v251, 128
    %330 = vxpose.xlu0.b32.cont [7/16] %v252, 128
    %331 = vxpose.xlu0.b32.cont [8/16] %v253, 128
    %332 = vxpose.xlu0.b32.cont [9/16] %v316, 128
    %333 = vxpose.xlu0.b32.cont [10/16] %v317, 128
    %334 = vxpose.xlu0.b32.cont [11/16] %v318, 128
    %335 = vxpose.xlu0.b32.cont [12/16] %v319, 128
    %336 = vxpose.xlu0.b32.cont [13/16] %v320, 128
    %337 = vxpose.xlu0.b32.cont [14/16] %v321, 128
    %338 = vxpose.xlu0.b32.cont [15/16] %v322, 128
    %339 = vxpose.xlu0.b32.end [16/16] %v323, 128
    %v340 = vpop.trf.xlu0
    %v341 = vpop.trf.xlu0
    %v342 = vpop.trf.xlu0
    %v343 = vpop.trf.xlu0
    %v344 = vpop.trf.xlu0
    %v345 = vpop.trf.xlu0
    %v346 = vpop.trf.xlu0
    %v347 = vpop.trf.xlu0
    %v348 = vpop.trf.xlu0
    %v349 = vpop.trf.xlu0
    %v350 = vpop.trf.xlu0
    %v351 = vpop.trf.xlu0
    %v352 = vpop.trf.xlu0
    %v353 = vpop.trf.xlu0
    %v354 = vpop.trf.xlu0
    %v355 = vpop.trf.xlu0
    %372 = vrot.lane.b32.xlu0 %v340, 64
    %v373 = vpop.permute.xlu0 %372
    %374 = vrot.lane.b32.xlu0 %v341, 64
    %v375 = vpop.permute.xlu0 %374
    %376 = vrot.lane.b32.xlu0 %v342, 64
    %v377 = vpop.permute.xlu0 %376
    %378 = vrot.lane.b32.xlu0 %v343, 64
    %v379 = vpop.permute.xlu0 %378
    %380 = vrot.lane.b32.xlu0 %v344, 64
    %v381 = vpop.permute.xlu0 %380
    %382 = vrot.lane.b32.xlu0 %v345, 64
    %v383 = vpop.permute.xlu0 %382
    %384 = vrot.lane.b32.xlu0 %v346, 64
    %v385 = vpop.permute.xlu0 %384
    %386 = vrot.lane.b32.xlu0 %v347, 64
    %v387 = vpop.permute.xlu0 %386
    %388 = vrot.lane.b32.xlu0 %v348, 64
    %v389 = vpop.permute.xlu0 %388
    %390 = vrot.lane.b32.xlu0 %v349, 64
    %v391 = vpop.permute.xlu0 %390
    %392 = vrot.lane.b32.xlu0 %v350, 64
    %v393 = vpop.permute.xlu0 %392
    %394 = vrot.lane.b32.xlu0 %v351, 64
    %v395 = vpop.permute.xlu0 %394
    %396 = vrot.lane.b32.xlu0 %v352, 64
    %v397 = vpop.permute.xlu0 %396
    %398 = vrot.lane.b32.xlu0 %v353, 64
    %v399 = vpop.permute.xlu0 %398
    %400 = vrot.lane.b32.xlu0 %v354, 64
    %v401 = vpop.permute.xlu0 %400
    %402 = vrot.lane.b32.xlu0 %v355, 64
    %v403 = vpop.permute.xlu0 %402
    %v404 = vld [vmem:[#allocation2 + $0x100] sm:$0xff]
    %v405 = vld [vmem:[#allocation2 + $0x110] sm:$0xff]
    %v406 = vld [vmem:[#allocation2 + $0x120] sm:$0xff]
    %v407 = vld [vmem:[#allocation2 + $0x130] sm:$0xff]
    %v408 = vld [vmem:[#allocation2 + $0x140] sm:$0xff]
    %v409 = vld [vmem:[#allocation2 + $0x150] sm:$0xff]
    %v410 = vld [vmem:[#allocation2 + $0x160] sm:$0xff]
    %v411 = vld [vmem:[#allocation2 + $0x170] sm:$0xff]
    %v412 = vld [vmem:[#allocation2 + $0x180] ss:$0 sm:$0xff]
    %vm413 = vcmask 523264
    %v414 = vsel %vm413, %v340, 0
    %v416 = vsel %vm413, %v341, 0
    %v418 = vsel %vm413, %v342, 0
    %v420 = vsel %vm413, %v343, 0
    %v422 = vsel %vm413, %v344, 0
    %v424 = vsel %vm413, %v345, 0
    %v426 = vsel %vm413, %v346, 0
    %v428 = vsel %vm413, %v347, 0
    %v430 = vsel %vm413, %v348, 0
    %v432 = vsel %vm413, %v349, 0
    %v434 = vsel %vm413, %v350, 0
    %v436 = vsel %vm413, %v351, 0
    %v438 = vsel %vm413, %v352, 0
    %v440 = vsel %vm413, %v353, 0
    %v442 = vsel %vm413, %v354, 0
    %v444 = vsel %vm413, %v355, 0
    %v446 = vsel %vm413, %v373, 0
    %v448 = vsel %vm413, %v375, 0
    %v450 = vsel %vm413, %v377, 0
    %v452 = vsel %vm413, %v379, 0
    %v454 = vsel %vm413, %v381, 0
    %v456 = vsel %vm413, %v383, 0
    %v458 = vsel %vm413, %v385, 0
    %v460 = vsel %vm413, %v387, 0
    %v462 = vsel %vm413, %v389, 0
    %v464 = vsel %vm413, %v391, 0
    %v466 = vsel %vm413, %v393, 0
    %v468 = vsel %vm413, %v395, 0
    %v470 = vsel %vm413, %v397, 0
    %v472 = vsel %vm413, %v399, 0
    %v474 = vsel %vm413, %v401, 0
    %v476 = vsel %vm413, %v403, 0
    %478 = vmatprep.subr.mxu0 0.0
    %479 = vmatpush1.msra.mxu0 %v404
    %480 = vmatprep.subr.mxu0 0.0
    %481 = vmatpush1.msra.mxu0 %v405
    %482 = vmatprep.subr.mxu0 0.0
    %483 = vmatpush1.msra.mxu0 %v406
    %484 = vmatprep.subr.mxu0 0.0
    %485 = vmatpush1.msra.mxu0 %v407
    %486 = vmatprep.subr.mxu0 0.0
    %487 = vmatpush1.msra.mxu0 %v408
    %488 = vmatprep.subr.mxu0 0.0
    %489 = vmatpush1.msra.mxu0 %v409
    %490 = vmatprep.subr.mxu0 0.0
    %491 = vmatpush1.msra.mxu0 %v410
    %492 = vmatprep.subr.mxu0 0.0
    %493 = vmatpush1.msra.mxu0 %v411
    %494 = vmatprep.subr.mxu0 0.0
    %495 = vmatpush1.msra.mxu0 0.0
    %496 = vmatprep.subr.mxu0 0.0
    %497 = vmatpush1.msra.mxu0 0.0
    %498 = vmatprep.subr.mxu0 0.0
    %499 = vmatpush1.msra.mxu0 0.0
    %500 = vmatprep.subr.mxu0 0.0
    %501 = vmatpush1.msra.mxu0 0.0
    %502 = vmatprep.subr.mxu0 0.0
    %503 = vmatpush1.msra.mxu0 0.0
    %504 = vmatprep.subr.mxu0 0.0
    %505 = vmatpush1.msra.mxu0 0.0
    %506 = vmatprep.subr.mxu0 0.0
    %507 = vmatpush1.msra.mxu0 0.0
    %508 = vmatprep.subr.mxu0 0.0
    %509 = vmatpush1.msra.mxu0 0.0
    %510 = vmatprep.subr.mxu0 0.0
    %511 = vmatpush1.msra.mxu0 0.0
    %512 = vmatprep.subr.mxu0 0.0
    %513 = vmatpush1.msra.mxu0 0.0
    %514 = vmatprep.subr.mxu0 0.0
    %515 = vmatpush1.msra.mxu0 0.0
    %516 = vmatprep.subr.mxu0 0.0
    %517 = vmatpush1.msra.mxu0 0.0
    %518 = vmatprep.subr.mxu0 0.0
    %519 = vmatpush1.msra.mxu0 0.0
    %520 = vmatprep.subr.mxu0 0.0
    %521 = vmatpush1.msra.mxu0 0.0
    %522 = vmatprep.subr.mxu0 0.0
    %523 = vmatpush1.msra.mxu0 0.0
    %524 = vmatprep.subr.mxu0 0.0
    %525 = vmatpush1.msra.mxu0 0.0
    %526 = vmatprep.subr.mxu0 0.0
    %527 = vmatpush1.msra.mxu0 0.0
    %528 = vmatprep.subr.mxu0 0.0
    %529 = vmatpush1.msra.mxu0 0.0
    %530 = vmatprep.subr.mxu0 0.0
    %531 = vmatpush1.msra.mxu0 0.0
    %532 = vmatprep.subr.mxu0 0.0
    %533 = vmatpush1.msra.mxu0 0.0
    %534 = vmatprep.subr.mxu0 0.0
    %535 = vmatpush1.msra.mxu0 0.0
    %536 = vmatprep.subr.mxu0 0.0
    %537 = vmatpush1.msra.mxu0 0.0
    %538 = vmatprep.subr.mxu0 0.0
    %539 = vmatpush1.msra.mxu0 0.0
    %540 = vmatprep.subr.mxu0 0.0
    %541 = vmatpush1.msra.mxu0 0.0
    %542 = vmatprep.mubr.f32.mxu0 0.0
    %543 = vmatmul.mubr.f32.gmra.mrb[0].mxu0 %v414
    %v544 = vpop.f32.mrb[0].mxu0
    %v545 = vadd.f32 %v412, %v544
    %v546 = vpop.f32.mrb[0].mxu0
    %547 = vmatprep.mubr.f32.mxu0 0.0
    %548 = vmatmul.mubr.f32.gmra.mrb[0].mxu0 %v416
    %v549 = vpop.f32.mrb[0].mxu0
    %v550 = vadd.f32 %v412, %v549
    %v551 = vpop.f32.mrb[0].mxu0
    %552 = vmatprep.mubr.f32.mxu0 0.0
    %553 = vmatmul.mubr.f32.gmra.mrb[0].mxu0 %v418
    %v554 = vpop.f32.mrb[0].mxu0
    %v555 = vadd.f32 %v412, %v554
    %v556 = vpop.f32.mrb[0].mxu0
    %557 = vmatprep.mubr.f32.mxu0 0.0
    %558 = vmatmul.mubr.f32.gmra.mrb[0].mxu0 %v420
    %v559 = vpop.f32.mrb[0].mxu0
    %v560 = vadd.f32 %v412, %v559
    %v561 = vpop.f32.mrb[0].mxu0
    %562 = vmatprep.mubr.f32.mxu0 0.0
    %563 = vmatmul.mubr.f32.gmra.mrb[0].mxu0 %v422
    %v564 = vpop.f32.mrb[0].mxu0
    %v565 = vadd.f32 %v412, %v564
    %v566 = vpop.f32.mrb[0].mxu0
    %567 = vmatprep.mubr.f32.mxu0 0.0
    %568 = vmatmul.mubr.f32.gmra.mrb[0].mxu0 %v424
    %v569 = vpop.f32.mrb[0].mxu0
    %v570 = vadd.f32 %v412, %v569
    %v571 = vpop.f32.mrb[0].mxu0
    %572 = vmatprep.mubr.f32.mxu0 0.0
    %573 = vmatmul.mubr.f32.gmra.mrb[0].mxu0 %v426
    %v574 = vpop.f32.mrb[0].mxu0
    %v575 = vadd.f32 %v412, %v574
    %v576 = vpop.f32.mrb[0].mxu0
    %577 = vmatprep.mubr.f32.mxu0 0.0
    %578 = vmatmul.mubr.f32.gmra.mrb[0].mxu0 %v428
    %v579 = vpop.f32.mrb[0].mxu0
    %v580 = vadd.f32 %v412, %v579
    %v581 = vpop.f32.mrb[0].mxu0
    %582 = vmatprep.mubr.f32.mxu0 0.0
    %583 = vmatmul.mubr.f32.gmra.mrb[0].mxu0 %v430
    %v584 = vpop.f32.mrb[0].mxu0
    %v585 = vadd.f32 %v412, %v584
    %v586 = vpop.f32.mrb[0].mxu0
    %587 = vmatprep.mubr.f32.mxu0 0.0
    %588 = vmatmul.mubr.f32.gmra.mrb[0].mxu0 %v432
    %v589 = vpop.f32.mrb[0].mxu0
    %v590 = vadd.f32 %v412, %v589
    %v591 = vpop.f32.mrb[0].mxu0
    %592 = vmatprep.mubr.f32.mxu0 0.0
    %593 = vmatmul.mubr.f32.gmra.mrb[0].mxu0 %v434
    %v594 = vpop.f32.mrb[0].mxu0
    %v595 = vadd.f32 %v412, %v594
    %v596 = vpop.f32.mrb[0].mxu0
    %597 = vmatprep.mubr.f32.mxu0 0.0
    %598 = vmatmul.mubr.f32.gmra.mrb[0].mxu0 %v436
    %v599 = vpop.f32.mrb[0].mxu0
    %v600 = vadd.f32 %v412, %v599
    %v601 = vpop.f32.mrb[0].mxu0
    %602 = vmatprep.mubr.f32.mxu0 0.0
    %603 = vmatmul.mubr.f32.gmra.mrb[0].mxu0 %v438
    %v604 = vpop.f32.mrb[0].mxu0
    %v605 = vadd.f32 %v412, %v604
    %v606 = vpop.f32.mrb[0].mxu0
    %607 = vmatprep.mubr.f32.mxu0 0.0
    %608 = vmatmul.mubr.f32.gmra.mrb[0].mxu0 %v440
    %v609 = vpop.f32.mrb[0].mxu0
    %v610 = vadd.f32 %v412, %v609
    %v611 = vpop.f32.mrb[0].mxu0
    %612 = vmatprep.mubr.f32.mxu0 0.0
    %613 = vmatmul.mubr.f32.gmra.mrb[0].mxu0 %v442
    %v614 = vpop.f32.mrb[0].mxu0
    %v615 = vadd.f32 %v412, %v614
    %v616 = vpop.f32.mrb[0].mxu0
    %617 = vmatprep.mubr.f32.mxu0 0.0
    %618 = vmatmul.mubr.f32.gmra.mrb[0].mxu0 %v444
    %v619 = vpop.f32.mrb[0].mxu0
    %v620 = vadd.f32 %v412, %v619
    %v621 = vpop.f32.mrb[0].mxu0
    %622 = vmatprep.mubr.f32.mxu0 0.0
    %623 = vmatmul.mubr.f32.gmra.mrb[0].mxu0 %v446
    %v624 = vpop.f32.mrb[0].mxu0
    %v625 = vadd.f32 %v412, %v624
    %v626 = vpop.f32.mrb[0].mxu0
    %627 = vmatprep.mubr.f32.mxu0 0.0
    %628 = vmatmul.mubr.f32.gmra.mrb[0].mxu0 %v448
    %v629 = vpop.f32.mrb[0].mxu0
    %v630 = vadd.f32 %v412, %v629
    %v631 = vpop.f32.mrb[0].mxu0
    %632 = vmatprep.mubr.f32.mxu0 0.0
    %633 = vmatmul.mubr.f32.gmra.mrb[0].mxu0 %v450
    %v634 = vpop.f32.mrb[0].mxu0
    %v635 = vadd.f32 %v412, %v634
    %v636 = vpop.f32.mrb[0].mxu0
    %637 = vmatprep.mubr.f32.mxu0 0.0
    %638 = vmatmul.mubr.f32.gmra.mrb[0].mxu0 %v452
    %v639 = vpop.f32.mrb[0].mxu0
    %v640 = vadd.f32 %v412, %v639
    %v641 = vpop.f32.mrb[0].mxu0
    %642 = vmatprep.mubr.f32.mxu0 0.0
    %643 = vmatmul.mubr.f32.gmra.mrb[0].mxu0 %v454
    %v644 = vpop.f32.mrb[0].mxu0
    %v645 = vadd.f32 %v412, %v644
    %v646 = vpop.f32.mrb[0].mxu0
    %647 = vmatprep.mubr.f32.mxu0 0.0
    %648 = vmatmul.mubr.f32.gmra.mrb[0].mxu0 %v456
    %v649 = vpop.f32.mrb[0].mxu0
    %v650 = vadd.f32 %v412, %v649
    %v651 = vpop.f32.mrb[0].mxu0
    %652 = vmatprep.mubr.f32.mxu0 0.0
    %653 = vmatmul.mubr.f32.gmra.mrb[0].mxu0 %v458
    %v654 = vpop.f32.mrb[0].mxu0
    %v655 = vadd.f32 %v412, %v654
    %v656 = vpop.f32.mrb[0].mxu0
    %657 = vmatprep.mubr.f32.mxu0 0.0
    %658 = vmatmul.mubr.f32.gmra.mrb[0].mxu0 %v460
    %v659 = vpop.f32.mrb[0].mxu0
    %v660 = vadd.f32 %v412, %v659
    %v661 = vpop.f32.mrb[0].mxu0
    %662 = vmatprep.mubr.f32.mxu0 0.0
    %663 = vmatmul.mubr.f32.gmra.mrb[0].mxu0 %v462
    %v664 = vpop.f32.mrb[0].mxu0
    %v665 = vadd.f32 %v412, %v664
    %v666 = vpop.f32.mrb[0].mxu0
    %667 = vmatprep.mubr.f32.mxu0 0.0
    %668 = vmatmul.mubr.f32.gmra.mrb[0].mxu0 %v464
    %v669 = vpop.f32.mrb[0].mxu0
    %v670 = vadd.f32 %v412, %v669
    %v671 = vpop.f32.mrb[0].mxu0
    %672 = vmatprep.mubr.f32.mxu0 0.0
    %673 = vmatmul.mubr.f32.gmra.mrb[0].mxu0 %v466
    %v674 = vpop.f32.mrb[0].mxu0
    %v675 = vadd.f32 %v412, %v674
    %v676 = vpop.f32.mrb[0].mxu0
    %677 = vmatprep.mubr.f32.mxu0 0.0
    %678 = vmatmul.mubr.f32.gmra.mrb[0].mxu0 %v468
    %v679 = vpop.f32.mrb[0].mxu0
    %v680 = vadd.f32 %v412, %v679
    %v681 = vpop.f32.mrb[0].mxu0
    %682 = vmatprep.mubr.f32.mxu0 0.0
    %683 = vmatmul.mubr.f32.gmra.mrb[0].mxu0 %v470
    %v684 = vpop.f32.mrb[0].mxu0
    %v685 = vadd.f32 %v412, %v684
    %v686 = vpop.f32.mrb[0].mxu0
    %687 = vmatprep.mubr.f32.mxu0 0.0
    %688 = vmatmul.mubr.f32.gmra.mrb[0].mxu0 %v472
    %v689 = vpop.f32.mrb[0].mxu0
    %v690 = vadd.f32 %v412, %v689
    %v691 = vpop.f32.mrb[0].mxu0
    %692 = vmatprep.mubr.f32.mxu0 0.0
    %693 = vmatmul.mubr.f32.gmra.mrb[0].mxu0 %v474
    %v694 = vpop.f32.mrb[0].mxu0
    %v695 = vadd.f32 %v412, %v694
    %v696 = vpop.f32.mrb[0].mxu0
    %697 = vmatprep.mubr.f32.mxu0 0.0
    %698 = vmatmul.mubr.f32.gmra.mrb[0].mxu0 %v476
    %v699 = vpop.f32.mrb[0].mxu0
    %v700 = vadd.f32 %v412, %v699
    %v701 = vpop.f32.mrb[0].mxu0
    %702 = vdwg.mxu0
    %v703 = vmax.f32 %v545, 0.0
    %v704 = vmax.f32 %v550, 0.0
    %v705 = vmax.f32 %v555, 0.0
    %v706 = vmax.f32 %v560, 0.0
    %v707 = vmax.f32 %v565, 0.0
    %v708 = vmax.f32 %v570, 0.0
    %v709 = vmax.f32 %v575, 0.0
    %v710 = vmax.f32 %v580, 0.0
    %v711 = vmax.f32 %v585, 0.0
    %v712 = vmax.f32 %v590, 0.0
    %v713 = vmax.f32 %v595, 0.0
    %v714 = vmax.f32 %v600, 0.0
    %v715 = vmax.f32 %v605, 0.0
    %v716 = vmax.f32 %v610, 0.0
    %v717 = vmax.f32 %v615, 0.0
    %v718 = vmax.f32 %v620, 0.0
    %v719 = vmax.f32 %v625, 0.0
    %v720 = vmax.f32 %v630, 0.0
    %v721 = vmax.f32 %v635, 0.0
    %v722 = vmax.f32 %v640, 0.0
    %v723 = vmax.f32 %v645, 0.0
    %v724 = vmax.f32 %v650, 0.0
    %v725 = vmax.f32 %v655, 0.0
    %v726 = vmax.f32 %v660, 0.0
    %v727 = vmax.f32 %v665, 0.0
    %v728 = vmax.f32 %v670, 0.0
    %v729 = vmax.f32 %v675, 0.0
    %v730 = vmax.f32 %v680, 0.0
    %v731 = vmax.f32 %v685, 0.0
    %v732 = vmax.f32 %v690, 0.0
    %v733 = vmax.f32 %v695, 0.0
    %v734 = vmax.f32 %v700, 0.0
    %v735 = vld [vmem:[#allocation2 + $0x190] sm:$0xff]
    %v736 = vld [vmem:[#allocation2 + $0x1a0] sm:$0xff]
    %v737 = vld [vmem:[#allocation2 + $0x1b0] sm:$0xff]
    %v738 = vld [vmem:[#allocation2 + $0x1c0] sm:$0xff]
    %v739 = vld [vmem:[#allocation2 + $0x1d0] sm:$0xff]
    %v740 = vld [vmem:[#allocation2 + $0x1e0] sm:$0xff]
    %v741 = vld [vmem:[#allocation2 + $0x1f0] sm:$0xff]
    %v742 = vld [vmem:[#allocation2 + $0x200] sm:$0xff]
    %v743 = vld [vmem:[#allocation2 + $0x210] sm:$0xff]
    %v744 = vld [vmem:[#allocation2 + $0x220] sm:$0xff]
    %v745 = vld [vmem:[#allocation2 + $0x230] sm:$0xff]
    %v746 = vld [vmem:[#allocation2 + $0x240] sm:$0xff]
    %v747 = vld [vmem:[#allocation2 + $0x250] sm:$0xff]
    %v748 = vld [vmem:[#allocation2 + $0x260] sm:$0xff]
    %v749 = vld [vmem:[#allocation2 + $0x270] sm:$0xff]
    %v750 = vld [vmem:[#allocation2 + $0x280] sm:$0xff]
    %v751 = vld [vmem:[#allocation2 + $0x290] ss:$0 sm:$0xff]
    %752 = vmatprep.subr.mxu0 0.0
    %753 = vmatpush1.msra.mxu0 %v735
    %754 = vmatprep.subr.mxu0 0.0
    %755 = vmatpush1.msra.mxu0 %v736
    %756 = vmatprep.subr.mxu0 0.0
    %757 = vmatpush1.msra.mxu0 %v737
    %758 = vmatprep.subr.mxu0 0.0
    %759 = vmatpush1.msra.mxu0 %v738
    %760 = vmatprep.subr.mxu0 0.0
    %761 = vmatpush1.msra.mxu0 %v739
    %762 = vmatprep.subr.mxu0 0.0
    %763 = vmatpush1.msra.mxu0 %v740
    %764 = vmatprep.subr.mxu0 0.0
    %765 = vmatpush1.msra.mxu0 %v741
    %766 = vmatprep.subr.mxu0 0.0
    %767 = vmatpush1.msra.mxu0 %v742
    %768 = vmatprep.subr.mxu0 0.0
    %769 = vmatpush1.msra.mxu0 %v743
    %770 = vmatprep.subr.mxu0 0.0
    %771 = vmatpush1.msra.mxu0 %v744
    %772 = vmatprep.subr.mxu0 0.0
    %773 = vmatpush1.msra.mxu0 %v745
    %774 = vmatprep.subr.mxu0 0.0
    %775 = vmatpush1.msra.mxu0 %v746
    %776 = vmatprep.subr.mxu0 0.0
    %777 = vmatpush1.msra.mxu0 %v747
    %778 = vmatprep.subr.mxu0 0.0
    %779 = vmatpush1.msra.mxu0 %v748
    %780 = vmatprep.subr.mxu0 0.0
    %781 = vmatpush1.msra.mxu0 %v749
    %782 = vmatprep.subr.mxu0 0.0
    %783 = vmatpush1.msra.mxu0 %v750
    %784 = vmatprep.subr.mxu0 0.0
    %785 = vmatpush1.msra.mxu0 0.0
    %786 = vmatprep.subr.mxu0 0.0
    %787 = vmatpush1.msra.mxu0 0.0
    %788 = vmatprep.subr.mxu0 0.0
    %789 = vmatpush1.msra.mxu0 0.0
    %790 = vmatprep.subr.mxu0 0.0
    %791 = vmatpush1.msra.mxu0 0.0
    %792 = vmatprep.subr.mxu0 0.0
    %793 = vmatpush1.msra.mxu0 0.0
    %794 = vmatprep.subr.mxu0 0.0
    %795 = vmatpush1.msra.mxu0 0.0
    %796 = vmatprep.subr.mxu0 0.0
    %797 = vmatpush1.msra.mxu0 0.0
    %798 = vmatprep.subr.mxu0 0.0
    %799 = vmatpush1.msra.mxu0 0.0
    %800 = vmatprep.subr.mxu0 0.0
    %801 = vmatpush1.msra.mxu0 0.0
    %802 = vmatprep.subr.mxu0 0.0
    %803 = vmatpush1.msra.mxu0 0.0
    %804 = vmatprep.subr.mxu0 0.0
    %805 = vmatpush1.msra.mxu0 0.0
    %806 = vmatprep.subr.mxu0 0.0
    %807 = vmatpush1.msra.mxu0 0.0
    %808 = vmatprep.subr.mxu0 0.0
    %809 = vmatpush1.msra.mxu0 0.0
    %810 = vmatprep.subr.mxu0 0.0
    %811 = vmatpush1.msra.mxu0 0.0
    %812 = vmatprep.subr.mxu0 0.0
    %813 = vmatpush1.msra.mxu0 0.0
    %814 = vmatprep.subr.mxu0 0.0
    %815 = vmatpush1.msra.mxu0 0.0
    %816 = vmatprep.mubr.f32.mxu0 0.0
    %817 = vmatmul.mubr.f32.gmra.mrb[0].mxu0 %v703
    %v818 = vpop.f32.mrb[0].mxu0
    %v819 = vadd.f32 %v751, %v818
    %v820 = vpop.f32.mrb[0].mxu0
    %821 = vmatprep.mubr.f32.mxu0 0.0
    %822 = vmatmul.mubr.f32.gmra.mrb[0].mxu0 %v704
    %v823 = vpop.f32.mrb[0].mxu0
    %v824 = vadd.f32 %v751, %v823
    %v825 = vpop.f32.mrb[0].mxu0
    %826 = vmatprep.mubr.f32.mxu0 0.0
    %827 = vmatmul.mubr.f32.gmra.mrb[0].mxu0 %v705
    %v828 = vpop.f32.mrb[0].mxu0
    %v829 = vadd.f32 %v751, %v828
    %v830 = vpop.f32.mrb[0].mxu0
    %831 = vmatprep.mubr.f32.mxu0 0.0
    %832 = vmatmul.mubr.f32.gmra.mrb[0].mxu0 %v706
    %v833 = vpop.f32.mrb[0].mxu0
    %v834 = vadd.f32 %v751, %v833
    %v835 = vpop.f32.mrb[0].mxu0
    %836 = vmatprep.mubr.f32.mxu0 0.0
    %837 = vmatmul.mubr.f32.gmra.mrb[0].mxu0 %v707
    %v838 = vpop.f32.mrb[0].mxu0
    %v839 = vadd.f32 %v751, %v838
    %v840 = vpop.f32.mrb[0].mxu0
    %841 = vmatprep.mubr.f32.mxu0 0.0
    %842 = vmatmul.mubr.f32.gmra.mrb[0].mxu0 %v708
    %v843 = vpop.f32.mrb[0].mxu0
    %v844 = vadd.f32 %v751, %v843
    %v845 = vpop.f32.mrb[0].mxu0
    %846 = vmatprep.mubr.f32.mxu0 0.0
    %847 = vmatmul.mubr.f32.gmra.mrb[0].mxu0 %v709
    %v848 = vpop.f32.mrb[0].mxu0
    %v849 = vadd.f32 %v751, %v848
    %v850 = vpop.f32.mrb[0].mxu0
    %851 = vmatprep.mubr.f32.mxu0 0.0
    %852 = vmatmul.mubr.f32.gmra.mrb[0].mxu0 %v710
    %v853 = vpop.f32.mrb[0].mxu0
    %v854 = vadd.f32 %v751, %v853
    %v855 = vpop.f32.mrb[0].mxu0
    %856 = vmatprep.mubr.f32.mxu0 0.0
    %857 = vmatmul.mubr.f32.gmra.mrb[0].mxu0 %v711
    %v858 = vpop.f32.mrb[0].mxu0
    %v859 = vadd.f32 %v751, %v858
    %v860 = vpop.f32.mrb[0].mxu0
    %861 = vmatprep.mubr.f32.mxu0 0.0
    %862 = vmatmul.mubr.f32.gmra.mrb[0].mxu0 %v712
    %v863 = vpop.f32.mrb[0].mxu0
    %v864 = vadd.f32 %v751, %v863
    %v865 = vpop.f32.mrb[0].mxu0
    %866 = vmatprep.mubr.f32.mxu0 0.0
    %867 = vmatmul.mubr.f32.gmra.mrb[0].mxu0 %v713
    %v868 = vpop.f32.mrb[0].mxu0
    %v869 = vadd.f32 %v751, %v868
    %v870 = vpop.f32.mrb[0].mxu0
    %871 = vmatprep.mubr.f32.mxu0 0.0
    %872 = vmatmul.mubr.f32.gmra.mrb[0].mxu0 %v714
    %v873 = vpop.f32.mrb[0].mxu0
    %v874 = vadd.f32 %v751, %v873
    %v875 = vpop.f32.mrb[0].mxu0
    %876 = vmatprep.mubr.f32.mxu0 0.0
    %877 = vmatmul.mubr.f32.gmra.mrb[0].mxu0 %v715
    %v878 = vpop.f32.mrb[0].mxu0
    %v879 = vadd.f32 %v751, %v878
    %v880 = vpop.f32.mrb[0].mxu0
    %881 = vmatprep.mubr.f32.mxu0 0.0
    %882 = vmatmul.mubr.f32.gmra.mrb[0].mxu0 %v716
    %v883 = vpop.f32.mrb[0].mxu0
    %v884 = vadd.f32 %v751, %v883
    %v885 = vpop.f32.mrb[0].mxu0
    %886 = vmatprep.mubr.f32.mxu0 0.0
    %887 = vmatmul.mubr.f32.gmra.mrb[0].mxu0 %v717
    %v888 = vpop.f32.mrb[0].mxu0
    %v889 = vadd.f32 %v751, %v888
    %v890 = vpop.f32.mrb[0].mxu0
    %891 = vmatprep.mubr.f32.mxu0 0.0
    %892 = vmatmul.mubr.f32.gmra.mrb[0].mxu0 %v718
    %v893 = vpop.f32.mrb[0].mxu0
    %v894 = vadd.f32 %v751, %v893
    %v895 = vpop.f32.mrb[0].mxu0
    %896 = vmatprep.mubr.f32.mxu0 0.0
    %897 = vmatmul.mubr.f32.gmra.mrb[0].mxu0 %v719
    %v898 = vpop.f32.mrb[0].mxu0
    %v899 = vadd.f32 %v751, %v898
    %v900 = vpop.f32.mrb[0].mxu0
    %901 = vmatprep.mubr.f32.mxu0 0.0
    %902 = vmatmul.mubr.f32.gmra.mrb[0].mxu0 %v720
    %v903 = vpop.f32.mrb[0].mxu0
    %v904 = vadd.f32 %v751, %v903
    %v905 = vpop.f32.mrb[0].mxu0
    %906 = vmatprep.mubr.f32.mxu0 0.0
    %907 = vmatmul.mubr.f32.gmra.mrb[0].mxu0 %v721
    %v908 = vpop.f32.mrb[0].mxu0
    %v909 = vadd.f32 %v751, %v908
    %v910 = vpop.f32.mrb[0].mxu0
    %911 = vmatprep.mubr.f32.mxu0 0.0
    %912 = vmatmul.mubr.f32.gmra.mrb[0].mxu0 %v722
    %v913 = vpop.f32.mrb[0].mxu0
    %v914 = vadd.f32 %v751, %v913
    %v915 = vpop.f32.mrb[0].mxu0
    %916 = vmatprep.mubr.f32.mxu0 0.0
    %917 = vmatmul.mubr.f32.gmra.mrb[0].mxu0 %v723
    %v918 = vpop.f32.mrb[0].mxu0
    %v919 = vadd.f32 %v751, %v918
    %v920 = vpop.f32.mrb[0].mxu0
    %921 = vmatprep.mubr.f32.mxu0 0.0
    %922 = vmatmul.mubr.f32.gmra.mrb[0].mxu0 %v724
    %v923 = vpop.f32.mrb[0].mxu0
    %v924 = vadd.f32 %v751, %v923
    %v925 = vpop.f32.mrb[0].mxu0
    %926 = vmatprep.mubr.f32.mxu0 0.0
    %927 = vmatmul.mubr.f32.gmra.mrb[0].mxu0 %v725
    %v928 = vpop.f32.mrb[0].mxu0
    %v929 = vadd.f32 %v751, %v928
    %v930 = vpop.f32.mrb[0].mxu0
    %931 = vmatprep.mubr.f32.mxu0 0.0
    %932 = vmatmul.mubr.f32.gmra.mrb[0].mxu0 %v726
    %v933 = vpop.f32.mrb[0].mxu0
    %v934 = vadd.f32 %v751, %v933
    %v935 = vpop.f32.mrb[0].mxu0
    %936 = vmatprep.mubr.f32.mxu0 0.0
    %937 = vmatmul.mubr.f32.gmra.mrb[0].mxu0 %v727
    %v938 = vpop.f32.mrb[0].mxu0
    %v939 = vadd.f32 %v751, %v938
    %v940 = vpop.f32.mrb[0].mxu0
    %941 = vmatprep.mubr.f32.mxu0 0.0
    %942 = vmatmul.mubr.f32.gmra.mrb[0].mxu0 %v728
    %v943 = vpop.f32.mrb[0].mxu0
    %v944 = vadd.f32 %v751, %v943
    %v945 = vpop.f32.mrb[0].mxu0
    %946 = vmatprep.mubr.f32.mxu0 0.0
    %947 = vmatmul.mubr.f32.gmra.mrb[0].mxu0 %v729
    %v948 = vpop.f32.mrb[0].mxu0
    %v949 = vadd.f32 %v751, %v948
    %v950 = vpop.f32.mrb[0].mxu0
    %951 = vmatprep.mubr.f32.mxu0 0.0
    %952 = vmatmul.mubr.f32.gmra.mrb[0].mxu0 %v730
    %v953 = vpop.f32.mrb[0].mxu0
    %v954 = vadd.f32 %v751, %v953
    %v955 = vpop.f32.mrb[0].mxu0
    %956 = vmatprep.mubr.f32.mxu0 0.0
    %957 = vmatmul.mubr.f32.gmra.mrb[0].mxu0 %v731
    %v958 = vpop.f32.mrb[0].mxu0
    %v959 = vadd.f32 %v751, %v958
    %v960 = vpop.f32.mrb[0].mxu0
    %961 = vmatprep.mubr.f32.mxu0 0.0
    %962 = vmatmul.mubr.f32.gmra.mrb[0].mxu0 %v732
    %v963 = vpop.f32.mrb[0].mxu0
    %v964 = vadd.f32 %v751, %v963
    %v965 = vpop.f32.mrb[0].mxu0
    %966 = vmatprep.mubr.f32.mxu0 0.0
    %967 = vmatmul.mubr.f32.gmra.mrb[0].mxu0 %v733
    %v968 = vpop.f32.mrb[0].mxu0
    %v969 = vadd.f32 %v751, %v968
    %v970 = vpop.f32.mrb[0].mxu0
    %971 = vmatprep.mubr.f32.mxu0 0.0
    %972 = vmatmul.mubr.f32.gmra.mrb[0].mxu0 %v734
    %v973 = vpop.f32.mrb[0].mxu0
    %v974 = vadd.f32 %v751, %v973
    %v975 = vpop.f32.mrb[0].mxu0
    %976 = vdwg.mxu0
    %v977 = vsel %vm413, %v819, -inf
    %v978 = vsel %vm413, %v824, -inf
    %v979 = vsel %vm413, %v829, -inf
    %v980 = vmax.f32 %v977, %v979
    %v981 = vsel %vm413, %v834, -inf
    %v982 = vmax.f32 %v978, %v981
    %v983 = vsel %vm413, %v839, -inf
    %v984 = vmax.f32 %v980, %v983
    %v985 = vsel %vm413, %v844, -inf
    %v986 = vmax.f32 %v982, %v985
    %v987 = vsel %vm413, %v849, -inf
    %v988 = vmax.f32 %v984, %v987
    %v989 = vsel %vm413, %v854, -inf
    %v990 = vmax.f32 %v986, %v989
    %v991 = vsel %vm413, %v859, -inf
    %v992 = vmax.f32 %v988, %v991
    %v993 = vsel %vm413, %v864, -inf
    %v994 = vmax.f32 %v990, %v993
    %v995 = vsel %vm413, %v869, -inf
    %v996 = vmax.f32 %v992, %v995
    %v997 = vsel %vm413, %v874, -inf
    %v998 = vmax.f32 %v994, %v997
    %v999 = vsel %vm413, %v879, -inf
    %v1000 = vmax.f32 %v996, %v999
    %v1001 = vsel %vm413, %v884, -inf
    %v1002 = vmax.f32 %v998, %v1001
    %v1003 = vsel %vm413, %v889, -inf
    %v1004 = vmax.f32 %v1000, %v1003
    %v1005 = vsel %vm413, %v894, -inf
    %v1006 = vmax.f32 %v1002, %v1005
    %v1007 = vmax.f32 %v1004, %v1006
    %v1008 = vrot.slane %v1007, 4
    %v1009 = vmax.f32 %v1007, %v1008
    %v1010 = vrot.slane %v1009, 2
    %v1011 = vmax.f32 %v1009, %v1010
    %v1012 = vrot.slane %v1011, 1
    %v1013 = vmax.f32 %v1011, %v1012
    %v1014 = vsel %vm413, %v899, -inf
    %v1015 = vsel %vm413, %v904, -inf
    %v1016 = vsel %vm413, %v909, -inf
    %v1017 = vmax.f32 %v1014, %v1016
    %v1018 = vsel %vm413, %v914, -inf
    %v1019 = vmax.f32 %v1015, %v1018
    %v1020 = vsel %vm413, %v919, -inf
    %v1021 = vmax.f32 %v1017, %v1020
    %v1022 = vsel %vm413, %v924, -inf
    %v1023 = vmax.f32 %v1019, %v1022
    %v1024 = vsel %vm413, %v929, -inf
    %v1025 = vmax.f32 %v1021, %v1024
    %v1026 = vsel %vm413, %v934, -inf
    %v1027 = vmax.f32 %v1023, %v1026
    %v1028 = vsel %vm413, %v939, -inf
    %v1029 = vmax.f32 %v1025, %v1028
    %v1030 = vsel %vm413, %v944, -inf
    %v1031 = vmax.f32 %v1027, %v1030
    %v1032 = vsel %vm413, %v949, -inf
    %v1033 = vmax.f32 %v1029, %v1032
    %v1034 = vsel %vm413, %v954, -inf
    %v1035 = vmax.f32 %v1031, %v1034
    %v1036 = vsel %vm413, %v959, -inf
    %v1037 = vmax.f32 %v1033, %v1036
    %v1038 = vsel %vm413, %v964, -inf
    %v1039 = vmax.f32 %v1035, %v1038
    %v1040 = vsel %vm413, %v969, -inf
    %v1041 = vmax.f32 %v1037, %v1040
    %v1042 = vsel %vm413, %v974, -inf
    %v1043 = vmax.f32 %v1039, %v1042
    %v1044 = vmax.f32 %v1041, %v1043
    %v1045 = vrot.slane %v1044, 4
    %v1046 = vmax.f32 %v1044, %v1045
    %v1047 = vrot.slane %v1046, 2
    %v1048 = vmax.f32 %v1046, %v1047
    %v1049 = vrot.slane %v1048, 1
    %v1050 = vmax.f32 %v1048, %v1049
    %v1051 = vld [vmem:[#allocation2 + $0x2a0] sm:$0xff]
    %v1052 = vld [vmem:[#allocation2 + $0x2b0] sm:$0xff]
    %v1053 = vld [vmem:[#allocation2 + $0x2c0] sm:$0xff]
    %v1054 = vld [vmem:[#allocation2 + $0x2d0] sm:$0xff]
    %v1055 = vld [vmem:[#allocation2 + $0x2e0] sm:$0xff]
    %v1056 = vld [vmem:[#allocation2 + $0x2f0] sm:$0xff]
    %v1057 = vld [vmem:[#allocation2 + $0x300] sm:$0xff]
    %v1058 = vld [vmem:[#allocation2 + $0x310] sm:$0xff]
    %v1059 = vld [vmem:[#allocation2 + $0x320] ss:$0 sm:$0xff]
    %vm1062 = vcmask 1041409
    %v1063 = vsel %vm1062, %v1050, %v1013
    %v1064 = vsel %vm413, %v1063, 0
    %1066 = vmatprep.subr.mxu0 0.0
    %1067 = vmatpush1.msra.mxu0 %v1051
    %1068 = vmatprep.subr.mxu0 0.0
    %1069 = vmatpush1.msra.mxu0 %v1052
    %1070 = vmatprep.subr.mxu0 0.0
    %1071 = vmatpush1.msra.mxu0 %v1053
    %1072 = vmatprep.subr.mxu0 0.0
    %1073 = vmatpush1.msra.mxu0 %v1054
    %1074 = vmatprep.subr.mxu0 0.0
    %1075 = vmatpush1.msra.mxu0 %v1055
    %1076 = vmatprep.subr.mxu0 0.0
    %1077 = vmatpush1.msra.mxu0 %v1056
    %1078 = vmatprep.subr.mxu0 0.0
    %1079 = vmatpush1.msra.mxu0 %v1057
    %1080 = vmatprep.subr.mxu0 0.0
    %1081 = vmatpush1.msra.mxu0 %v1058
    %1082 = vmatprep.subr.mxu0 0.0
    %1083 = vmatpush1.msra.mxu0 0.0
    %1084 = vmatprep.subr.mxu0 0.0
    %1085 = vmatpush1.msra.mxu0 0.0
    %1086 = vmatprep.subr.mxu0 0.0
    %1087 = vmatpush1.msra.mxu0 0.0
    %1088 = vmatprep.subr.mxu0 0.0
    %1089 = vmatpush1.msra.mxu0 0.0
    %1090 = vmatprep.subr.mxu0 0.0
    %1091 = vmatpush1.msra.mxu0 0.0
    %1092 = vmatprep.subr.mxu0 0.0
    %1093 = vmatpush1.msra.mxu0 0.0
    %1094 = vmatprep.subr.mxu0 0.0
    %1095 = vmatpush1.msra.mxu0 0.0
    %1096 = vmatprep.subr.mxu0 0.0
    %1097 = vmatpush1.msra.mxu0 0.0
    %1098 = vmatprep.subr.mxu0 0.0
    %1099 = vmatpush1.msra.mxu0 0.0
    %1100 = vmatprep.subr.mxu0 0.0
    %1101 = vmatpush1.msra.mxu0 0.0
    %1102 = vmatprep.subr.mxu0 0.0
    %1103 = vmatpush1.msra.mxu0 0.0
    %1104 = vmatprep.subr.mxu0 0.0
    %1105 = vmatpush1.msra.mxu0 0.0
    %1106 = vmatprep.subr.mxu0 0.0
    %1107 = vmatpush1.msra.mxu0 0.0
    %1108 = vmatprep.subr.mxu0 0.0
    %1109 = vmatpush1.msra.mxu0 0.0
    %1110 = vmatprep.subr.mxu0 0.0
    %1111 = vmatpush1.msra.mxu0 0.0
    %1112 = vmatprep.subr.mxu0 0.0
    %1113 = vmatpush1.msra.mxu0 0.0
    %1114 = vmatprep.subr.mxu0 0.0
    %1115 = vmatpush1.msra.mxu0 0.0
    %1116 = vmatprep.subr.mxu0 0.0
    %1117 = vmatpush1.msra.mxu0 0.0
    %1118 = vmatprep.subr.mxu0 0.0
    %1119 = vmatpush1.msra.mxu0 0.0
    %1120 = vmatprep.subr.mxu0 0.0
    %1121 = vmatpush1.msra.mxu0 0.0
    %1122 = vmatprep.subr.mxu0 0.0
    %1123 = vmatpush1.msra.mxu0 0.0
    %1124 = vmatprep.subr.mxu0 0.0
    %1125 = vmatpush1.msra.mxu0 0.0
    %1126 = vmatprep.subr.mxu0 0.0
    %1127 = vmatpush1.msra.mxu0 0.0
    %1128 = vmatprep.subr.mxu0 0.0
    %1129 = vmatpush1.msra.mxu0 0.0
    %1130 = vmatprep.mubr.f32.mxu0 0.0
    %1131 = vmatmul.mubr.f32.gmra.mrb[0].mxu0 %v1064
    %v1132 = vpop.f32.mrb[0].mxu0
    %v1133 = vadd.f32 %v1059, %v1132
    %v1134 = vpop.f32.mrb[0].mxu0
    %1135 = vdwg.mxu0
    %v1136 = vmax.f32 %v1133, 0.0
    %v1137 = vld [vmem:[#allocation2 + $0x330] sm:$0xff]
    %v1138 = vld [vmem:[#allocation2 + $0x340] sm:$0xff]
    %v1139 = vld [vmem:[#allocation2 + $0x350] sm:$0xff]
    %v1140 = vld [vmem:[#allocation2 + $0x360] sm:$0xff]
    %v1141 = vld [vmem:[#allocation2 + $0x370] sm:$0xff]
    %v1142 = vld [vmem:[#allocation2 + $0x380] sm:$0xff]
    %v1143 = vld [vmem:[#allocation2 + $0x390] sm:$0xff]
    %v1144 = vld [vmem:[#allocation2 + $0x3a0] sm:$0xff]
    %v1145 = vld [vmem:[#allocation2 + $0x3b0] ss:$0 sm:$0xff]
    %v1147 = vsel %vm413, %v1136, 0
    %1149 = vmatprep.subr.mxu0 0.0
    %1150 = vmatpush1.msra.mxu0 %v1137
    %1151 = vmatprep.subr.mxu0 0.0
    %1152 = vmatpush1.msra.mxu0 %v1138
    %1153 = vmatprep.subr.mxu0 0.0
    %1154 = vmatpush1.msra.mxu0 %v1139
    %1155 = vmatprep.subr.mxu0 0.0
    %1156 = vmatpush1.msra.mxu0 %v1140
    %1157 = vmatprep.subr.mxu0 0.0
    %1158 = vmatpush1.msra.mxu0 %v1141
    %1159 = vmatprep.subr.mxu0 0.0
    %1160 = vmatpush1.msra.mxu0 %v1142
    %1161 = vmatprep.subr.mxu0 0.0
    %1162 = vmatpush1.msra.mxu0 %v1143
    %1163 = vmatprep.subr.mxu0 0.0
    %1164 = vmatpush1.msra.mxu0 %v1144
    %1165 = vmatprep.subr.mxu0 0.0
    %1166 = vmatpush1.msra.mxu0 0.0
    %1167 = vmatprep.subr.mxu0 0.0
    %1168 = vmatpush1.msra.mxu0 0.0
    %1169 = vmatprep.subr.mxu0 0.0
    %1170 = vmatpush1.msra.mxu0 0.0
    %1171 = vmatprep.subr.mxu0 0.0
    %1172 = vmatpush1.msra.mxu0 0.0
    %1173 = vmatprep.subr.mxu0 0.0
    %1174 = vmatpush1.msra.mxu0 0.0
    %1175 = vmatprep.subr.mxu0 0.0
    %1176 = vmatpush1.msra.mxu0 0.0
    %1177 = vmatprep.subr.mxu0 0.0
    %1178 = vmatpush1.msra.mxu0 0.0
    %1179 = vmatprep.subr.mxu0 0.0
    %1180 = vmatpush1.msra.mxu0 0.0
    %1181 = vmatprep.subr.mxu0 0.0
    %1182 = vmatpush1.msra.mxu0 0.0
    %1183 = vmatprep.subr.mxu0 0.0
    %1184 = vmatpush1.msra.mxu0 0.0
    %1185 = vmatprep.subr.mxu0 0.0
    %1186 = vmatpush1.msra.mxu0 0.0
    %1187 = vmatprep.subr.mxu0 0.0
    %1188 = vmatpush1.msra.mxu0 0.0
    %1189 = vmatprep.subr.mxu0 0.0
    %1190 = vmatpush1.msra.mxu0 0.0
    %1191 = vmatprep.subr.mxu0 0.0
    %1192 = vmatpush1.msra.mxu0 0.0
    %1193 = vmatprep.subr.mxu0 0.0
    %1194 = vmatpush1.msra.mxu0 0.0
    %1195 = vmatprep.subr.mxu0 0.0
    %1196 = vmatpush1.msra.mxu0 0.0
    %1197 = vmatprep.subr.mxu0 0.0
    %1198 = vmatpush1.msra.mxu0 0.0
    %1199 = vmatprep.subr.mxu0 0.0
    %1200 = vmatpush1.msra.mxu0 0.0
    %1201 = vmatprep.subr.mxu0 0.0
    %1202 = vmatpush1.msra.mxu0 0.0
    %1203 = vmatprep.subr.mxu0 0.0
    %1204 = vmatpush1.msra.mxu0 0.0
    %1205 = vmatprep.subr.mxu0 0.0
    %1206 = vmatpush1.msra.mxu0 0.0
    %1207 = vmatprep.subr.mxu0 0.0
    %1208 = vmatpush1.msra.mxu0 0.0
    %1209 = vmatprep.subr.mxu0 0.0
    %1210 = vmatpush1.msra.mxu0 0.0
    %1211 = vmatprep.subr.mxu0 0.0
    %1212 = vmatpush1.msra.mxu0 0.0
    %1213 = vmatprep.mubr.f32.mxu0 0.0
    %1214 = vmatmul.mubr.f32.gmra.mrb[0].mxu0 %v1147
    %v1215 = vpop.f32.mrb[0].mxu0
    %v1216 = vadd.f32 %v1145, %v1215
    %v1217 = vpop.f32.mrb[0].mxu0
    %1218 = vdwg.mxu0
    %v1219 = vmax.f32 %v1216, 0.0
    %v1220 = vld [vmem:[#allocation2 + $0x3c0] sm:$0xff]
    %v1221 = vld [vmem:[#allocation2 + $0x3c8] sm:$0xff]
    %v1222 = vld [vmem:[#allocation2 + $0x3d0] sm:$0xff]
    %v1223 = vld [vmem:[#allocation2 + $0x3d8] sm:$0xff]
    %v1224 = vld [vmem:[#allocation2 + $0x3e0] sm:$0xff]
    %v1225 = vld [vmem:[#allocation2 + $0x3e8] sm:$0xff]
    %v1226 = vld [vmem:[#allocation2 + $0x3f0] sm:$0xff]
    %v1227 = vld [vmem:[#allocation2 + $0x3f8] sm:$0xff]
    %v1228 = vld [vmem:[#allocation2 + $0x400] sm:$0xff]
    %v1229 = vld [vmem:[#allocation2 + $0x408] sm:$0xff]
    %v1230 = vld [vmem:[#allocation2 + $0x410] sm:$0xff]
    %v1231 = vld [vmem:[#allocation2 + $0x418] sm:$0xff]
    %v1232 = vld [vmem:[#allocation2 + $0x420] sm:$0xff]
    %v1233 = vld [vmem:[#allocation2 + $0x428] sm:$0xff]
    %v1234 = vld [vmem:[#allocation2 + $0x430] sm:$0xff]
    %v1235 = vld [vmem:[#allocation2 + $0x438] sm:$0xff]
    %s1236 = scalar_lea.vmem [#allocation2], 1088
    %v1237 = vld [vmem:[%s1236] ss:$8 sm:$0x3]
    %v1239 = vlaneseq
    %v1240 = vshrl.u32 %v1239, 7
    %v1241 = vsub.s32 0, %v1240
    %v1242 = vrot.slane %v1237, %v1241
    %v1243 = vlaneseq
    %v1244 = vshrl.u32 %v1243, 7
    %v1245 = vsub.s32 1, %v1244
    %v1246 = vrot.slane %v1237, %v1245
    %v1250 = vsel %vm413, %v1219, 0
    %1252 = vmatprep.subr.mxu0 %v1221
    %1253 = vmatpush1.msra.mxu0 %v1220
    %1254 = vmatprep.subr.mxu0 %v1223
    %1255 = vmatpush1.msra.mxu0 %v1222
    %1256 = vmatprep.subr.mxu0 %v1225
    %1257 = vmatpush1.msra.mxu0 %v1224
    %1258 = vmatprep.subr.mxu0 %v1227
    %1259 = vmatpush1.msra.mxu0 %v1226
    %1260 = vmatprep.subr.mxu0 %v1229
    %1261 = vmatpush1.msra.mxu0 %v1228
    %1262 = vmatprep.subr.mxu0 %v1231
    %1263 = vmatpush1.msra.mxu0 %v1230
    %1264 = vmatprep.subr.mxu0 %v1233
    %1265 = vmatpush1.msra.mxu0 %v1232
    %1266 = vmatprep.subr.mxu0 %v1235
    %1267 = vmatpush1.msra.mxu0 %v1234
    %1268 = vmatprep.subr.mxu0 0.0
    %1269 = vmatpush1.msra.mxu0 0.0
    %1270 = vmatprep.subr.mxu0 0.0
    %1271 = vmatpush1.msra.mxu0 0.0
    %1272 = vmatprep.subr.mxu0 0.0
    %1273 = vmatpush1.msra.mxu0 0.0
    %1274 = vmatprep.subr.mxu0 0.0
    %1275 = vmatpush1.msra.mxu0 0.0
    %1276 = vmatprep.subr.mxu0 0.0
    %1277 = vmatpush1.msra.mxu0 0.0
    %1278 = vmatprep.subr.mxu0 0.0
    %1279 = vmatpush1.msra.mxu0 0.0
    %1280 = vmatprep.subr.mxu0 0.0
    %1281 = vmatpush1.msra.mxu0 0.0
    %1282 = vmatprep.subr.mxu0 0.0
    %1283 = vmatpush1.msra.mxu0 0.0
    %1284 = vmatprep.subr.mxu0 0.0
    %1285 = vmatpush1.msra.mxu0 0.0
    %1286 = vmatprep.subr.mxu0 0.0
    %1287 = vmatpush1.msra.mxu0 0.0
    %1288 = vmatprep.subr.mxu0 0.0
    %1289 = vmatpush1.msra.mxu0 0.0
    %1290 = vmatprep.subr.mxu0 0.0
    %1291 = vmatpush1.msra.mxu0 0.0
    %1292 = vmatprep.subr.mxu0 0.0
    %1293 = vmatpush1.msra.mxu0 0.0
    %1294 = vmatprep.subr.mxu0 0.0
    %1295 = vmatpush1.msra.mxu0 0.0
    %1296 = vmatprep.subr.mxu0 0.0
    %1297 = vmatpush1.msra.mxu0 0.0
    %1298 = vmatprep.subr.mxu0 0.0
    %1299 = vmatpush1.msra.mxu0 0.0
    %1300 = vmatprep.subr.mxu0 0.0
    %1301 = vmatpush1.msra.mxu0 0.0
    %1302 = vmatprep.subr.mxu0 0.0
    %1303 = vmatpush1.msra.mxu0 0.0
    %1304 = vmatprep.subr.mxu0 0.0
    %1305 = vmatpush1.msra.mxu0 0.0
    %1306 = vmatprep.subr.mxu0 0.0
    %1307 = vmatpush1.msra.mxu0 0.0
    %1308 = vmatprep.subr.mxu0 0.0
    %1309 = vmatpush1.msra.mxu0 0.0
    %1310 = vmatprep.subr.mxu0 0.0
    %1311 = vmatpush1.msra.mxu0 0.0
    %1312 = vmatprep.subr.mxu0 0.0
    %1313 = vmatpush1.msra.mxu0 0.0
    %1314 = vmatprep.subr.mxu0 0.0
    %1315 = vmatpush1.msra.mxu0 0.0
    %1316 = vmatprep.mubr.f32.mxu0 0.0
    %1317 = vmatmul.mubr.f32.gmra.mrb[0].mxu0 %v1250
    %v1318 = vpop.f32.mrb[0].mxu0
    %v1319 = vadd.f32 %v1242, %v1318
    %v1320 = vpop.f32.mrb[0].mxu0
    %v1321 = vadd.f32 %v1246, %v1320
    %1322 = vdwg.mxu0
    %1326 = vrot.lane.b32.xlu0 %v1319, 64
    %v1327 = vpop.permute.xlu0 %1326
    %1328 = vrot.lane.b32.xlu0 %v1321, 64
    %v1329 = vpop.permute.xlu0 %1328
    %v1330 = vsel %vm413, %v1327, %v1329
    %v1332 = vsel %vm413, %v1063, %v1327
    %v1334 = vcombine.low %v1332, %v1330
    %v1336 = vunpack.c.l.s4 1983009808
    %v1337 = vunpack.c.0.s8 %v1336
    %v1338 = vlaneseq
    %v1339 = vshrl.u32 %v1338, 7
    %v1340 = vsub.s32 %v1337, %v1339
    %v1341 = vrot.slane %v1334, %v1340
    %1343 = vst [vmem:[%s2] sm:$0xf] %v1341
    // Predicated region
    $region14: #{reconstruction_net.1} parent=1 // pred_check
      _
    $region15: #{reconstruction_net.1} parent=1 // pred_check_branch
      %1345 = sbr.rel (0) target = $region17
    $region16: #{reconstruction_net.1} parent=1 // pred_region
      _
    $region17: #{reconstruction_net.1} parent=1 // pred_fallthru
      _
    // Predicated region
    $region18: #{reconstruction_net.1} parent=1 // pred_check
      _
    $region19: #{reconstruction_net.1} parent=1 // pred_check_branch
      %1347 = sbr.rel (0) target = $region21
    $region20: #{reconstruction_net.1} parent=1 // pred_region
      _
    $region21: #{reconstruction_net.1} parent=1 // pred_fallthru
      _
    %1348 = vsyncpa [#allocation3], 1

</llo_original>
